<compile_context>
chip_gen: v6e
topology: v6e:2x2x1
jax: 0.10.0
libtpu: 0.0.40
codegen_flags: <defaults>
</compile_context>

<pallas_src>
import jax
import jax.numpy as jnp
from jax.experimental import pallas as pl
from jax.experimental.pallas import tpu as pltpu


# ----------------------------------------------------------------------------
# VMEM budgeting / tiling helpers
# ----------------------------------------------------------------------------
def _vmem_budget():
    """(tile_budget_bytes, vmem_limit_bytes) sized per TPU generation."""
    try:
        kind = jax.devices()[0].device_kind.lower()
    except Exception:
        kind = ""
    if "v7" in kind:
        # v7x: only 64 MiB physical VMEM per TensorCore -> ~half the v6e tile.
        return 20 << 20, 48 << 20
    if "v5" in kind or "v6" in kind:
        # v5e/v6e: 128 MiB physical; raise the scoped limit well above default.
        return 40 << 20, 96 << 20
    # Unknown / older generations: stay conservative, keep the default limit.
    return 12 << 20, None


def _sublane_pack(*dtypes):
    """Sublane packing granularity: 8 rows (32-bit), 16 (16-bit), 32 (8-bit)."""
    min_b = min(jnp.dtype(d).itemsize for d in dtypes)
    return 8 * max(1, 4 // max(1, min_b))


def _pick_row_tile(rows, per_row_bytes, pack, budget_bytes):
    tile = max(pack, (budget_bytes // max(per_row_bytes, 1)) // pack * pack)
    # Never exceed the (sublane-rounded) row count.
    tile = min(tile, pl.cdiv(rows, pack) * pack)
    # Keep >= ~8 grid steps when there is enough work (pipelining / both v7x cores).
    tile = min(tile, max(pack, pl.cdiv(pl.cdiv(rows, 8), pack) * pack))
    return int(tile)


def _pick_col_tile(n_out):
    """Lane-dense vocab tile: multiple of 128 when divisible, else one full block."""
    if n_out % 128 == 0:
        for cand in (2048, 1024, 512, 256, 128):
            if n_out % cand == 0:
                return cand
    return n_out


# ----------------------------------------------------------------------------
# Fused RMSNorm + Linear  ==  AoATransformer.to_logits
# ----------------------------------------------------------------------------
def _make_head_kernel(dim, eps):
    scale = float(dim) ** -0.5
    eps = float(eps)

    def kernel(x_ref, g_ref, w_ref, b_ref, o_ref):
        # x_ref: (row_tile, dim); g_ref: (1, dim); w_ref: (dim, col_tile);
        # b_ref: (1, col_tile); o_ref: (row_tile, col_tile).
        x = x_ref[...].astype(jnp.float32)
        sumsq = jnp.sum(x * x, axis=-1, keepdims=True)
        norm = jnp.maximum(jnp.sqrt(sumsq) * scale, eps)
        inv = pl.reciprocal(norm, approx=False)          # EUP slot, VALU stays free
        g = g_ref[...].astype(jnp.float32)
        xn = (x * inv) * g                                # (row_tile, dim), f32
        w = w_ref[...]
        acc = jnp.dot(xn.astype(w.dtype), w,              # MXU
                      preferred_element_type=jnp.float32)
        acc = acc + b_ref[...].astype(jnp.float32)
        o_ref[...] = acc.astype(o_ref.dtype)

    return kernel


def rmsnorm_linear(x, g, w, b, eps=1e-8, row_tile=None):
    """Fused: RMSNorm(x; g, eps) @ w + b.  x: (..., dim), w: (dim, n_out)."""
    orig_shape = x.shape
    dim = orig_shape[-1]
    n_out = w.shape[-1]
    rows = 1
    for s in orig_shape[:-1]:
        rows *= s

    x2d = x.reshape(rows, dim)
    g2d = g.reshape(1, dim)
    b2d = b.reshape(1, n_out)
    out_dtype = x.dtype

    in_b = jnp.dtype(x.dtype).itemsize
    w_b = jnp.dtype(w.dtype).itemsize
    out_b = jnp.dtype(out_dtype).itemsize

    budget, vmem_limit = _vmem_budget()
    col_tile = _pick_col_tile(n_out)

    if row_tile is None:
        # Reserve VMEM for the (double-buffered) weight/bias tiles, spend the
        # rest on rows: double-buffered x tile + f32 working copy + out tile.
        w_tile_bytes = 2 * (dim * col_tile * w_b + col_tile * 4)
        row_budget = max(1 << 20, budget - w_tile_bytes)
        per_row = dim * (2 * in_b + 4) + col_tile * (2 * out_b + 4)
        pack = _sublane_pack(x.dtype, out_dtype)
        row_tile = _pick_row_tile(rows, per_row, pack, row_budget)

    grid = (pl.cdiv(rows, row_tile), pl.cdiv(n_out, col_tile))

    cp_kwargs = dict(dimension_semantics=("parallel", "parallel"))
    if vmem_limit is not None:
        cp_kwargs["vmem_limit_bytes"] = int(vmem_limit)

    out = pl.pallas_call(
        _make_head_kernel(dim, eps),
        out_shape=jax.ShapeDtypeStruct((rows, n_out), out_dtype),
        grid_spec=pltpu.PrefetchScalarGridSpec(
            num_scalar_prefetch=0,
            grid=grid,
            in_specs=[
                pl.BlockSpec((row_tile, dim), lambda i, j: (i, 0)),
                pl.BlockSpec((1, dim), lambda i, j: (0, 0)),
                pl.BlockSpec((dim, col_tile), lambda i, j: (0, j)),
                pl.BlockSpec((1, col_tile), lambda i, j: (0, j)),
            ],
            out_specs=pl.BlockSpec((row_tile, col_tile), lambda i, j: (i, j)),
        ),
        compiler_params=pltpu.CompilerParams(**cp_kwargs),
    )(x2d, g2d, w, b2d)

    return out.reshape(orig_shape[:-1] + (n_out,))


# ----------------------------------------------------------------------------
# Standalone RMSNorm kernel (kept for the un-fused use case)
# ----------------------------------------------------------------------------
def _make_rmsnorm_kernel(dim, eps):
    scale = float(dim) ** -0.5
    eps = float(eps)

    def kernel(x_ref, g_ref, o_ref):
        x = x_ref[...].astype(jnp.float32)
        sumsq = jnp.sum(x * x, axis=-1, keepdims=True)
        norm = jnp.maximum(jnp.sqrt(sumsq) * scale, eps)
        inv = pl.reciprocal(norm, approx=False)
        g = g_ref[...].astype(jnp.float32)
        o_ref[...] = (x * inv * g).astype(o_ref.dtype)

    return kernel


def rmsnorm(x, g, eps=1e-8, row_tile=None):
    """RMSNorm over the last axis of x. x: (..., dim), g: (dim,)."""
    orig_shape = x.shape
    dim = orig_shape[-1]
    rows = 1
    for s in orig_shape[:-1]:
        rows *= s

    x2d = x.reshape(rows, dim)
    g2d = g.reshape(1, dim)

    budget, vmem_limit = _vmem_budget()
    if row_tile is None:
        in_b = jnp.dtype(x.dtype).itemsize
        per_row = dim * (4 * in_b + 2 * 4)
        pack = _sublane_pack(x.dtype)
        row_tile = _pick_row_tile(rows, per_row, pack, budget)

    grid = (pl.cdiv(rows, row_tile),)

    cp_kwargs = dict(dimension_semantics=("parallel",))
    if vmem_limit is not None:
        cp_kwargs["vmem_limit_bytes"] = int(vmem_limit)

    out = pl.pallas_call(
        _make_rmsnorm_kernel(dim, eps),
        out_shape=jax.ShapeDtypeStruct((rows, dim), x.dtype),
        grid_spec=pltpu.PrefetchScalarGridSpec(
            num_scalar_prefetch=0,
            grid=grid,
            in_specs=[
                pl.BlockSpec((row_tile, dim), lambda i: (i, 0)),
                pl.BlockSpec((1, dim), lambda i: (0, 0)),
            ],
            out_specs=pl.BlockSpec((row_tile, dim), lambda i: (i, 0)),
        ),
        compiler_params=pltpu.CompilerParams(**cp_kwargs),
    )(x2d, g2d)

    return out.reshape(orig_shape)


# ----------------------------------------------------------------------------
# Pure-JAX references (match the PyTorch forward)
# ----------------------------------------------------------------------------
def rmsnorm_ref(x, g, eps=1e-8):
    dim = x.shape[-1]
    xf = x.astype(jnp.float32)
    norm = jnp.sqrt(jnp.sum(xf * xf, axis=-1, keepdims=True)) * (dim ** -0.5)
    norm = jnp.maximum(norm, eps)
    return (xf / norm * g.astype(jnp.float32)).astype(x.dtype)


def rmsnorm_linear_ref(x, g, w, b, eps=1e-8):
    dim = x.shape[-1]
    xf = x.astype(jnp.float32)
    norm = jnp.sqrt(jnp.sum(xf * xf, axis=-1, keepdims=True)) * (dim ** -0.5)
    norm = jnp.maximum(norm, eps)
    xn = (xf / norm * g.astype(jnp.float32)).astype(w.dtype)
    y = jnp.dot(xn.reshape(-1, dim), w, preferred_element_type=jnp.float32)
    y = y + b.astype(jnp.float32)
    return y.reshape(x.shape[:-1] + (w.shape[-1],)).astype(x.dtype)


if __name__ == "__main__":
    key = jax.random.PRNGKey(0)
    k1, k2, k3, kg, kw, kb = jax.random.split(key, 6)

    dim, num_tokens = 512, 100          # AoATransformer(512, 1, 100)

    # Shared parameters (nn.Linear-style init scale, RMSNorm g near ones).
    g = 1.0 + 0.1 * jax.random.normal(kg, (dim,), dtype=jnp.float32)
    lin_k = dim ** -0.5
    w = jax.random.uniform(kw, (dim, num_tokens), jnp.float32, -lin_k, lin_k)
    b = jax.random.uniform(kb, (num_tokens,), jnp.float32, -lin_k, lin_k)

    # Case 1: fused head at the spec's shapes — (batch=1, seq=10, dim=512).
    x1 = jax.random.normal(k1, (1, 10, dim), dtype=jnp.float32)
    o1 = jax.block_until_ready(rmsnorm_linear(x1, g, w, b))
    r1 = rmsnorm_linear_ref(x1, g, w, b)
    assert o1.shape == (1, 10, num_tokens)
    assert jnp.allclose(o1, r1, atol=2e-2, rtol=2e-2), "mismatch (head, case 1)"

    # Case 2: fused head, ragged rows + multi-step row grid (4*37 = 148 rows).
    x2 = jax.random.normal(k2, (4, 37, dim), dtype=jnp.float32)
    o2 = jax.block_until_ready(rmsnorm_linear(x2, g, w, b))
    r2 = rmsnorm_linear_ref(x2, g, w, b)
    assert jnp.allclose(o2, r2, atol=2e-2, rtol=2e-2), "mismatch (head, case 2)"

    # Case 3: fused head in bf16 (activations + weights).
    x3 = x2.astype(jnp.bfloat16)
    o3 = jax.block_until_ready(
        rmsnorm_linear(x3, g.astype(jnp.bfloat16),
                       w.astype(jnp.bfloat16), b.astype(jnp.bfloat16)))
    r3 = rmsnorm_linear_ref(x3, g.astype(jnp.bfloat16),
                            w.astype(jnp.bfloat16), b.astype(jnp.bfloat16))
    assert jnp.allclose(o3.astype(jnp.float32), r3.astype(jnp.float32),
                        atol=1e-1, rtol=5e-2), "mismatch (head, case 3)"

    # Case 4: standalone RMSNorm kernel (ragged rows, f32).
    x4 = jax.random.normal(k3, (3, 5, dim), dtype=jnp.float32)
    o4 = jax.block_until_ready(rmsnorm(x4, g))
    r4 = rmsnorm_ref(x4, g)
    assert jnp.allclose(o4, r4, atol=1e-5, rtol=1e-5), "mismatch (rmsnorm)"

    print("KERNEL_OK")
</pallas_src>

<mosaic_0001>
module attributes {stable_mosaic.version = 11 : i64} {
  func.func @kernel(%arg0: i32, %arg1: i32, %arg2: memref<8x512xf32, #tpu.memory_space<vmem>>, %arg3: memref<1x512xf32, #tpu.memory_space<vmem>>, %arg4: memref<512x100xf32, #tpu.memory_space<vmem>>, %arg5: memref<1x100xf32, #tpu.memory_space<vmem>>, %arg6: memref<8x100xf32, #tpu.memory_space<vmem>>) attributes {dimension_semantics = [#tpu.dimension_semantics<parallel>, #tpu.dimension_semantics<parallel>], iteration_bounds = array<i64: 2, 1>, scalar_prefetch = 0 : i64, scratch_operands = 0 : i64, tpu.core_type = #tpu.core_type<tc>, window_params = [{transform_indices = @transform_0, window_bounds = array<i64: 8, 512>}, {pipeline_mode = #tpu.pipeline_mode<synchronous>, transform_indices = @transform_1, window_bounds = array<i64: 1, 512>}, {transform_indices = @transform_2, window_bounds = array<i64: 512, 100>}, {transform_indices = @transform_3, window_bounds = array<i64: 1, 100>}, {transform_indices = @transform_4, window_bounds = array<i64: 8, 100>}]} {
    %c0 = arith.constant 0 : index
    %c0_0 = arith.constant 0 : index
    %0 = vector.load %arg2[%c0, %c0_0] : memref<8x512xf32, #tpu.memory_space<vmem>>, vector<8x512xf32>
    %1 = arith.mulf %0, %0 : vector<8x512xf32>
    %cst = arith.constant dense<0.000000e+00> : vector<8xf32>
    %2 = vector.multi_reduction <add>, %1, %cst [1] : vector<8x512xf32> to vector<8xf32>
    %3 = vector.shape_cast %2 : vector<8xf32> to vector<8x1xf32>
    %4 = math.sqrt %3 : vector<8x1xf32>
    %cst_1 = arith.constant 0.0441941731 : f32
    %5 = vector.broadcast %cst_1 : f32 to vector<8x1xf32>
    %6 = arith.mulf %4, %5 : vector<8x1xf32>
    %cst_2 = arith.constant 9.99999993E-9 : f32
    %7 = vector.broadcast %cst_2 : f32 to vector<8x1xf32>
    %8 = arith.maximumf %6, %7 : vector<8x1xf32>
    %9 = tpu.reciprocal %8 : vector<8x1xf32> -> vector<8x1xf32>
    %c0_3 = arith.constant 0 : index
    %c0_4 = arith.constant 0 : index
    %10 = vector.load %arg3[%c0_3, %c0_4] : memref<1x512xf32, #tpu.memory_space<vmem>>, vector<1x512xf32>
    %11 = vector.broadcast %9 : vector<8x1xf32> to vector<8x512xf32>
    %12 = arith.mulf %0, %11 : vector<8x512xf32>
    %13 = vector.broadcast %10 : vector<1x512xf32> to vector<8x512xf32>
    %14 = arith.mulf %12, %13 : vector<8x512xf32>
    %c0_5 = arith.constant 0 : index
    %c0_6 = arith.constant 0 : index
    %15 = vector.load %arg4[%c0_5, %c0_6] : memref<512x100xf32, #tpu.memory_space<vmem>>, vector<512x100xf32>
    %cst_7 = arith.constant dense<0.000000e+00> : vector<8x100xf32>
    %16 = tpu.matmul %14, %15, %cst_7 {dimension_numbers = #tpu.dot_dimension_numbers<[1], [0], [0], [1], [0, 0, 1, 1], [], []>} : vector<8x512xf32>, vector<512x100xf32>, vector<8x100xf32> -> vector<8x100xf32>
    %c0_8 = arith.constant 0 : index
    %c0_9 = arith.constant 0 : index
    %17 = vector.load %arg5[%c0_8, %c0_9] : memref<1x100xf32, #tpu.memory_space<vmem>>, vector<1x100xf32>
    %18 = vector.broadcast %17 : vector<1x100xf32> to vector<8x100xf32>
    %19 = arith.addf %16, %18 : vector<8x100xf32>
    %c0_10 = arith.constant 0 : index
    %c0_11 = arith.constant 0 : index
    %20 = vector.load %arg6[%c0_10, %c0_11] : memref<8x100xf32, #tpu.memory_space<vmem>>, vector<8x100xf32>
    tpu.vector_store %arg6[%c0_10, %c0_11], %19 {strides = array<i32>} : memref<8x100xf32, #tpu.memory_space<vmem>>, vector<8x100xf32>,
    return
  }
  func.func @transform_0(%arg0: i32, %arg1: i32) -> (i32, i32) {
    %c0_i32 = arith.constant 0 : i32
    %c0_i32_0 = arith.constant 0 : i32
    return %arg0, %c0_i32 : i32, i32
  }
  func.func @transform_1(%arg0: i32, %arg1: i32) -> (i32, i32) {
    %c0_i32 = arith.constant 0 : i32
    %c0_i32_0 = arith.constant 0 : i32
    %c0_i32_1 = arith.constant 0 : i32
    return %c0_i32, %c0_i32_0 : i32, i32
  }
  func.func @transform_2(%arg0: i32, %arg1: i32) -> (i32, i32) {
    %c0_i32 = arith.constant 0 : i32
    %c0_i32_0 = arith.constant 0 : i32
    return %c0_i32, %arg1 : i32, i32
  }
  func.func @transform_3(%arg0: i32, %arg1: i32) -> (i32, i32) {
    %c0_i32 = arith.constant 0 : i32
    %c0_i32_0 = arith.constant 0 : i32
    return %c0_i32, %arg1 : i32, i32
  }
  func.func @transform_4(%arg0: i32, %arg1: i32) -> (i32, i32) {
    %c0_i32 = arith.constant 0 : i32
    return %arg0, %arg1 : i32, i32
  }
}

</mosaic_0001>

<llo_original>
// kernel: tpu_custom_call.1
$region0: #{tpu_custom_call.1}
  #allocation0 [shape = 'u32[]', space=smem, size = 0x4, offset = 0x4, fixed_abs, tag = 'smem constant byte address 0x4 - core index']
  #allocation1 [shape = 'u32[144,128]{1,0:T(1,128)}', space=vmem, size = 0x12000, scoped, tag = 'internal scratch']
  %s0 = inlined_call_operand.vmem [shape: f32[10,512], index: 0, kind: input, shape index: {}]
  %s1 = inlined_call_operand.vmem [shape: f32[1,512], index: 1, kind: input, shape index: {}]
  %s2 = inlined_call_operand.vmem [shape: f32[512,100], index: 2, kind: input, shape index: {}]
  %s3 = inlined_call_operand.vmem [shape: f32[1,100], index: 3, kind: input, shape index: {}]
  %s4 = inlined_call_operand.hbm [shape: f32[10,100], index: 4, kind: output, shape index: {}]
  %s5 = sld [smem:[#allocation0]]
  $region49: #{tpu_custom_call.1} parent=0
    _
  %s7 = ssub.s32 1, %s5
  %s8 = scalar_select 0, %s7, %s5
  $region1: #{tpu_custom_call.1} parent=0
    #allocation2 [shape = 'u8[8192]{0}', space=vmem, size = 0x2000, scoped, tag = 'output window, operand 0']
    #allocation3 [shape = 's32[2]{0}', space=sflag, size = 0x8, scoped, tag = 'scoped memory for tpu_custom_call.1']
    %9 = vsyncpa [#allocation3], 0
    %s10 = scalar_lea.sflag [#allocation3], 1
    %11 = vsyncpa %s10, 0
    loop: start=0, step=1, limit=4
    $region2: #{tpu_custom_call.1} parent=1 // loop_pre_header
      _
    $region3: #{tpu_custom_call.1} parent=1 // loop_header
      %s13 = sphi 0, %s17
      %p14 = scmp.ge.s32.totalorder %s13, 4
      %s20 = sphi 0, %s32
      %s21 = sphi 0, %s28
      %s22 = sphi 0, %s20
      %s23 = sphi 0, %s21
      %s24 = sphi 0, %s22
      %s25 = sphi 0, %s23
      %s35 = sphi 0, %s37
      %s38 = sphi 0, %s35
      %s39 = sphi 0, %s38
      %s55 = sphi 0, %s39
      %s59 = sphi 0, %s59
      %s61 = sphi 0, %s59
      %s62 = sphi 0, %s61
      %s76 = sphi 0, %s62
      %s82 = sphi 0, %s84
      %s85 = sphi 0, %s82
      %s86 = sphi 0, %s85
      %s102 = sphi 0, %s86
      %s108 = sphi 0, %s110
      %s111 = sphi 0, %s108
      %s112 = sphi 0, %s111
      %s128 = sphi 0, %s112
      %s136 = sphi 0, %s138
      %s139 = sphi 0, %s136
      %s140 = sphi 0, %s139
      %s156 = sphi 0, %s140
    $region4: #{tpu_custom_call.1} parent=1 // loop_header_branch
      %16 = sbr.rel (%p14) target = $region8
    $region5: #{tpu_custom_call.1} parent=1 // loop_body
      %s18 = ssub.s32 %s13, 1
      %s19 = ssub.s32 %s13, 2
      %s26 = sadd.s32 1, %s21
      %p27 = scmp.ge.s32.totalorder %s26, 1
      %s28 = scalar_select %p27, 0, %s26
      %s29 = sadd.s32 1, %s20
      %s30 = scalar_select %p27, %s29, %s20
      %p31 = scmp.ge.s32.totalorder %s30, 2
      %s32 = scalar_select %p31, 0, %s30
      %s33 = ssub.s32 %s20, %s32
      %p34 = scmp.eq.s32.totalorder %s33, 0
      %s36 = sadd.s32 %s35, 1
      %s37 = scalar_select %p34, %s35, %s36
      %p40 = pneg %p34
      %p41 = scmp.eq.s32.totalorder %s13, 1
      %p42 = por %p40, %p41
      %p43 = scmp.ne.s32.totalorder %s35, %s38
      %p44 = scmp.eq.s32.totalorder %s13, 0
      %p45 = por %p43, %p44
      %p46 = scmp.ne.s32.totalorder %s35, %s38
      %p47 = scmp.eq.s32.totalorder %s18, 1
      %p48 = por %p46, %p47
      %p49 = scmp.ne.s32.totalorder %s38, %s39
      %p50 = scmp.eq.s32.totalorder %s18, 0
      %p51 = por %p49, %p50
      %p52 = scmp.ne.s32.totalorder %s38, %s39
      %p53 = scmp.eq.s32.totalorder %s19, 1
      %p54 = por %p52, %p53
      %p56 = scmp.ne.s32.totalorder %s39, %s55
      %p57 = scmp.eq.s32.totalorder %s19, 0
      %p58 = por %p56, %p57
      %s60 = sadd.s32 %s59, 1
      %p63 = scmp.eq.s32.totalorder %s13, 1
      %p64 = scmp.ne.s32.totalorder %s59, %s61
      %p65 = scmp.eq.s32.totalorder %s13, 0
      %p66 = por %p64, %p65
      %p67 = scmp.ne.s32.totalorder %s59, %s61
      %p68 = scmp.eq.s32.totalorder %s18, 1
      %p69 = por %p67, %p68
      %p70 = scmp.ne.s32.totalorder %s61, %s62
      %p71 = scmp.eq.s32.totalorder %s18, 0
      %p72 = por %p70, %p71
      %p73 = scmp.ne.s32.totalorder %s61, %s62
      %p74 = scmp.eq.s32.totalorder %s19, 1
      %p75 = por %p73, %p74
      %p77 = scmp.ne.s32.totalorder %s62, %s76
      %p78 = scmp.eq.s32.totalorder %s19, 0
      %p79 = por %p77, %p78
      %s80 = ssub.s32 %s21, %s28
      %p81 = scmp.eq.s32.totalorder %s80, 0
      %s83 = sadd.s32 %s82, 1
      %s84 = scalar_select %p81, %s82, %s83
      %p87 = pneg %p81
      %p88 = scmp.eq.s32.totalorder %s13, 1
      %p89 = por %p87, %p88
      %p90 = scmp.ne.s32.totalorder %s82, %s85
      %p91 = scmp.eq.s32.totalorder %s13, 0
      %p92 = por %p90, %p91
      %p93 = scmp.ne.s32.totalorder %s82, %s85
      %p94 = scmp.eq.s32.totalorder %s18, 1
      %p95 = por %p93, %p94
      %p96 = scmp.ne.s32.totalorder %s85, %s86
      %p97 = scmp.eq.s32.totalorder %s18, 0
      %p98 = por %p96, %p97
      %p99 = scmp.ne.s32.totalorder %s85, %s86
      %p100 = scmp.eq.s32.totalorder %s19, 1
      %p101 = por %p99, %p100
      %p103 = scmp.ne.s32.totalorder %s86, %s102
      %p104 = scmp.eq.s32.totalorder %s19, 0
      %p105 = por %p103, %p104
      %s106 = ssub.s32 %s21, %s28
      %p107 = scmp.eq.s32.totalorder %s106, 0
      %s109 = sadd.s32 %s108, 1
      %s110 = scalar_select %p107, %s108, %s109
      %p113 = pneg %p107
      %p114 = scmp.eq.s32.totalorder %s13, 1
      %p115 = por %p113, %p114
      %p116 = scmp.ne.s32.totalorder %s108, %s111
      %p117 = scmp.eq.s32.totalorder %s13, 0
      %p118 = por %p116, %p117
      %p119 = scmp.ne.s32.totalorder %s108, %s111
      %p120 = scmp.eq.s32.totalorder %s18, 1
      %p121 = por %p119, %p120
      %p122 = scmp.ne.s32.totalorder %s111, %s112
      %p123 = scmp.eq.s32.totalorder %s18, 0
      %p124 = por %p122, %p123
      %p125 = scmp.ne.s32.totalorder %s111, %s112
      %p126 = scmp.eq.s32.totalorder %s19, 1
      %p127 = por %p125, %p126
      %p129 = scmp.ne.s32.totalorder %s112, %s128
      %p130 = scmp.eq.s32.totalorder %s19, 0
      %p131 = por %p129, %p130
      %s132 = ssub.s32 %s20, %s32
      %s133 = ssub.s32 %s21, %s28
      %s134 = sor.u32 %s132, %s133
      %p135 = scmp.eq.s32.totalorder %s134, 0
      %s137 = sadd.s32 %s136, 1
      %s138 = scalar_select %p135, %s136, %s137
      %p141 = pneg %p135
      %p142 = scmp.eq.s32.totalorder %s13, 1
      %p143 = por %p141, %p142
      %p144 = scmp.ne.s32.totalorder %s136, %s139
      %p145 = scmp.eq.s32.totalorder %s13, 0
      %p146 = por %p144, %p145
      %p147 = scmp.ne.s32.totalorder %s136, %s139
      %p148 = scmp.eq.s32.totalorder %s18, 1
      %p149 = por %p147, %p148
      %p150 = scmp.ne.s32.totalorder %s139, %s140
      %p151 = scmp.eq.s32.totalorder %s18, 0
      %p152 = por %p150, %p151
      %p153 = scmp.ne.s32.totalorder %s139, %s140
      %p154 = scmp.eq.s32.totalorder %s19, 1
      %p155 = por %p153, %p154
      %p157 = scmp.ne.s32.totalorder %s140, %s156
      %p158 = scmp.eq.s32.totalorder %s19, 0
      %p159 = por %p157, %p158
      %p160 = scmp.le.s32.totalorder 1, %s13
      %p161 = scmp.lt.s32.totalorder %s13, 3
      %p162 = pnand %p160, %p161
      %p163 = pneg %p162
      // Predicated region
      $region9: #{tpu_custom_call.1} parent=5 // pred_check
        _
      $region10: #{tpu_custom_call.1} parent=5 // pred_check_branch
        %165 = sbr.rel (%p162) target = $region12
      $region11: #{tpu_custom_call.1} parent=5 // pred_region
        %s166 = ssub.s32 %s13, 1
        // Predicated region
        $region13: #{tpu_custom_call.1} parent=11 // pred_check
          %p167 = pneg %p72
        $region14: #{tpu_custom_call.1} parent=11 // pred_check_branch
          %169 = sbr.rel (%p167) target = $region16
        $region15: #{tpu_custom_call.1} parent=11 // pred_region
          _
        $region16: #{tpu_custom_call.1} parent=11 // pred_fallthru
          _
        // Predicated region
        $region17: #{tpu_custom_call.1} parent=11 // pred_check
          %p170 = pneg %p98
        $region18: #{tpu_custom_call.1} parent=11 // pred_check_branch
          %172 = sbr.rel (%p170) target = $region20
        $region19: #{tpu_custom_call.1} parent=11 // pred_region
          %p173 = scmp.lt.s32.totalorder %s23, 0
          %s174 = scalar_select %p173, %s23, 0
          %s175 = smul.addr %s174, 8
          %s176 = scalar_lea.vmem %s2, %s175
        $region20: #{tpu_custom_call.1} parent=11 // pred_fallthru
          _
        // Predicated region
        $region21: #{tpu_custom_call.1} parent=11 // pred_check
          %p177 = pneg %p124
        $region22: #{tpu_custom_call.1} parent=11 // pred_check_branch
          %179 = sbr.rel (%p177) target = $region24
        $region23: #{tpu_custom_call.1} parent=11 // pred_region
          %p180 = scmp.lt.s32.totalorder %s23, 0
          %s181 = scalar_select %p180, %s23, 0
          %s182 = scalar_lea.vmem %s3, %s181
        $region24: #{tpu_custom_call.1} parent=11 // pred_fallthru
          _
      $region12: #{tpu_custom_call.1} parent=5 // pred_fallthru
        _
      %p183 = scmp.lt.s32.totalorder %s13, 2
      // Predicated region
      $region25: #{tpu_custom_call.1} parent=5 // pred_check
        %p184 = pneg %p183
      $region26: #{tpu_custom_call.1} parent=5 // pred_check_branch
        %186 = sbr.rel (%p184) target = $region28
      $region27: #{tpu_custom_call.1} parent=5 // pred_region
        // Predicated region
        $region29: #{tpu_custom_call.1} parent=27 // pred_check
          %p187 = pneg %p45
        $region30: #{tpu_custom_call.1} parent=27 // pred_check_branch
          %189 = sbr.rel (%p187) target = $region32
        $region31: #{tpu_custom_call.1} parent=27 // pred_region
          %p190 = scmp.lt.s32.totalorder %s20, 1
          %s191 = scalar_select %p190, %s20, 1
          %s192 = smul.addr %s191, 4
          %s193 = smul.addr %s192, 8
          %s194 = scalar_lea.vmem %s0, %s193
        $region32: #{tpu_custom_call.1} parent=27 // pred_fallthru
          _
      $region28: #{tpu_custom_call.1} parent=5 // pred_fallthru
        _
      %p195 = scmp.le.s32.totalorder 1, %s13
      %p196 = scmp.lt.s32.totalorder %s13, 3
      %p197 = pnand %p195, %p196
      %p198 = pneg %p197
      // Predicated region
      $region33: #{tpu_custom_call.1} parent=5 // pred_check
        _
      $region34: #{tpu_custom_call.1} parent=5 // pred_check_branch
        %200 = sbr.rel (%p197) target = $region36
      $region35: #{tpu_custom_call.1} parent=5 // pred_region
        %s201 = ssub.s32 %s13, 1
        %p202 = scmp.lt.s32.totalorder %s22, 1
        %s203 = scalar_select %p202, %s22, 1
        %s204 = smul.addr %s203, 4
        %s205 = smul.addr %s204, 8
        %s206 = scalar_lea.vmem %s0, %s205
        %p207 = pneg %p51
        %p208 = pneg %p48
        %p209 = pneg %p72
        %p210 = pneg %p69
        %p211 = scmp.lt.s32.totalorder %s23, 0
        %s212 = scalar_select %p211, %s23, 0
        %s213 = smul.addr %s212, 8
        %s214 = scalar_lea.vmem %s2, %s213
        %p215 = pneg %p98
        %p216 = pneg %p95
        %p217 = scmp.lt.s32.totalorder %s23, 0
        %s218 = scalar_select %p217, %s23, 0
        %s219 = scalar_lea.vmem %s3, %s218
        %p220 = pneg %p124
        %p221 = pneg %p121
        %p222 = pneg %p152
        %p223 = pneg %p149
        %s224 = sand.u32 %s139, 1
        %s225 = scalar_lea.sflag [#allocation3], %s224
        %s226 = sand.u32 %s139, 1
        %s227 = smul.addr %s226, 8
        %s228 = scalar_lea.vmem [#allocation2], %s227
        %p229 = scmp.lt.s32.totalorder %s22, 1
        %s230 = scalar_select %p229, %s22, 1
        %s231 = smul.addr %s230, 4
        %s232 = smul.addr %s231, 8
        %s233 = scalar_lea.vmem %s0, %s232
        %p234 = scmp.lt.s32.totalorder %s23, 0
        %s235 = scalar_select %p234, %s23, 0
        %s236 = smul.addr %s235, 8
        %s237 = scalar_lea.vmem %s2, %s236
        %p238 = scmp.lt.s32.totalorder %s23, 0
        %s239 = scalar_select %p238, %s23, 0
        %s240 = scalar_lea.vmem %s3, %s239
        %v241 = vld [vmem:[%s233] sm:$0xff]
        %v242 = vld [vmem:[%s233 + $0x8] sm:$0xff]
        %v243 = vld [vmem:[%s233 + $0x10] sm:$0xff]
        %v244 = vld [vmem:[%s233 + $0x18] sm:$0xff]
        %v245 = vmul.f32 %v241, %v241
        %v246 = vmul.f32 %v242, %v242
        %v247 = vmul.f32 %v243, %v243
        %v248 = vmul.f32 %v244, %v244
        %v249 = vadd.f32 %v245, %v246
        %v250 = vadd.f32 %v249, %v247
        %v251 = vadd.f32 %v250, %v248
        %252 = vadd.xlane.f32.xlu0 %v251
        %v253 = vpop.xlane.xlu0 %252
        %v254 = vrsqrt.pop %v253
        %v255 = vmul.f32 %v253, %v254
        %vm256 = vcmp.eq.f32.partialorder %v253, inf
        %v257 = vsel %vm256, %v253, %v255
        %vm258 = vcmp.eq.f32.partialorder %v253, 0.0
        %v259 = vand.u32 %v253, 2147483648
        %v260 = vsel %vm258, %v259, %v257
        %v261 = vmul.f32 %v260, 0.044194173
        %v262 = vmax.f32 %v261, 1e-08
        %v263 = vrcp.pop %v262
        %v264 = vld [vmem:[%s1] sm:$0xf]
        %v265 = vmul.f32 %v241, %v263
        %v266 = vmul.f32 %v242, %v263
        %v267 = vmul.f32 %v243, %v263
        %v268 = vmul.f32 %v244, %v263
        %v270 = vlaneseq
        %v271 = vshrl.u32 %v270, 7
        %v272 = vsub.s32 0, %v271
        %v273 = vrot.slane %v264, %v272
        %v274 = vlaneseq
        %v275 = vshrl.u32 %v274, 7
        %v276 = vsub.s32 1, %v275
        %v277 = vrot.slane %v264, %v276
        %v278 = vlaneseq
        %v279 = vshrl.u32 %v278, 7
        %v280 = vsub.s32 2, %v279
        %v281 = vrot.slane %v264, %v280
        %v282 = vlaneseq
        %v283 = vshrl.u32 %v282, 7
        %v284 = vsub.s32 3, %v283
        %v285 = vrot.slane %v264, %v284
        %v290 = vmul.f32 %v265, %v273
        %v291 = vmul.f32 %v266, %v277
        %v292 = vmul.f32 %v267, %v281
        %v293 = vmul.f32 %v268, %v285
        %v294 = vld [vmem:[%s237] sm:$0xff]
        %v295 = vld [vmem:[%s237 + $0x8] sm:$0xff]
        %v296 = vld [vmem:[%s237 + $0x10] sm:$0xff]
        %v297 = vld [vmem:[%s237 + $0x18] sm:$0xff]
        %v298 = vld [vmem:[%s237 + $0x20] sm:$0xff]
        %v299 = vld [vmem:[%s237 + $0x28] sm:$0xff]
        %v300 = vld [vmem:[%s237 + $0x30] sm:$0xff]
        %v301 = vld [vmem:[%s237 + $0x38] sm:$0xff]
        %v302 = vld [vmem:[%s237 + $0x40] sm:$0xff]
        %v303 = vld [vmem:[%s237 + $0x48] sm:$0xff]
        %v304 = vld [vmem:[%s237 + $0x50] sm:$0xff]
        %v305 = vld [vmem:[%s237 + $0x58] sm:$0xff]
        %v306 = vld [vmem:[%s237 + $0x60] sm:$0xff]
        %v307 = vld [vmem:[%s237 + $0x68] sm:$0xff]
        %v308 = vld [vmem:[%s237 + $0x70] sm:$0xff]
        %v309 = vld [vmem:[%s237 + $0x78] sm:$0xff]
        %v310 = vld [vmem:[%s237 + $0x80] sm:$0xff]
        %v311 = vld [vmem:[%s237 + $0x88] sm:$0xff]
        %v312 = vld [vmem:[%s237 + $0x90] sm:$0xff]
        %v313 = vld [vmem:[%s237 + $0x98] sm:$0xff]
        %v314 = vld [vmem:[%s237 + $0xa0] sm:$0xff]
        %v315 = vld [vmem:[%s237 + $0xa8] sm:$0xff]
        %v316 = vld [vmem:[%s237 + $0xb0] sm:$0xff]
        %v317 = vld [vmem:[%s237 + $0xb8] sm:$0xff]
        %v318 = vld [vmem:[%s237 + $0xc0] sm:$0xff]
        %v319 = vld [vmem:[%s237 + $0xc8] sm:$0xff]
        %v320 = vld [vmem:[%s237 + $0xd0] sm:$0xff]
        %v321 = vld [vmem:[%s237 + $0xd8] sm:$0xff]
        %v322 = vld [vmem:[%s237 + $0xe0] sm:$0xff]
        %v323 = vld [vmem:[%s237 + $0xe8] sm:$0xff]
        %v324 = vld [vmem:[%s237 + $0xf0] sm:$0xff]
        %v325 = vld [vmem:[%s237 + $0xf8] sm:$0xff]
        %v326 = vld [vmem:[%s237 + $0x100] sm:$0xff]
        %v327 = vld [vmem:[%s237 + $0x108] sm:$0xff]
        %v328 = vld [vmem:[%s237 + $0x110] sm:$0xff]
        %v329 = vld [vmem:[%s237 + $0x118] sm:$0xff]
        %v330 = vld [vmem:[%s237 + $0x120] sm:$0xff]
        %v331 = vld [vmem:[%s237 + $0x128] sm:$0xff]
        %v332 = vld [vmem:[%s237 + $0x130] sm:$0xff]
        %v333 = vld [vmem:[%s237 + $0x138] sm:$0xff]
        %v334 = vld [vmem:[%s237 + $0x140] sm:$0xff]
        %v335 = vld [vmem:[%s237 + $0x148] sm:$0xff]
        %v336 = vld [vmem:[%s237 + $0x150] sm:$0xff]
        %v337 = vld [vmem:[%s237 + $0x158] sm:$0xff]
        %v338 = vld [vmem:[%s237 + $0x160] sm:$0xff]
        %v339 = vld [vmem:[%s237 + $0x168] sm:$0xff]
        %v340 = vld [vmem:[%s237 + $0x170] sm:$0xff]
        %v341 = vld [vmem:[%s237 + $0x178] sm:$0xff]
        %v342 = vld [vmem:[%s237 + $0x180] sm:$0xff]
        %v343 = vld [vmem:[%s237 + $0x188] sm:$0xff]
        %v344 = vld [vmem:[%s237 + $0x190] sm:$0xff]
        %v345 = vld [vmem:[%s237 + $0x198] sm:$0xff]
        %v346 = vld [vmem:[%s237 + $0x1a0] sm:$0xff]
        %v347 = vld [vmem:[%s237 + $0x1a8] sm:$0xff]
        %v348 = vld [vmem:[%s237 + $0x1b0] sm:$0xff]
        %v349 = vld [vmem:[%s237 + $0x1b8] sm:$0xff]
        %v350 = vld [vmem:[%s237 + $0x1c0] sm:$0xff]
        %v351 = vld [vmem:[%s237 + $0x1c8] sm:$0xff]
        %v352 = vld [vmem:[%s237 + $0x1d0] sm:$0xff]
        %v353 = vld [vmem:[%s237 + $0x1d8] sm:$0xff]
        %v354 = vld [vmem:[%s237 + $0x1e0] sm:$0xff]
        %v355 = vld [vmem:[%s237 + $0x1e8] sm:$0xff]
        %v356 = vld [vmem:[%s237 + $0x1f0] sm:$0xff]
        %v357 = vld [vmem:[%s237 + $0x1f8] sm:$0xff]
        %v358 = vld [vmem:[%s240] sm:$0x1]
        %v360 = vlaneseq
        %v361 = vshrl.u32 %v360, 7
        %v362 = vsub.s32 0, %v361
        %v363 = vrot.slane %v358, %v362
        %365 = vmatprep.subr.mxu0 0.0
        %366 = vmatpush1.msra.mxu0 %v309
        %367 = vmatprep.subr.mxu0 0.0
        %368 = vmatpush1.msra.mxu0 %v308
        %369 = vmatprep.subr.mxu0 0.0
        %370 = vmatpush1.msra.mxu0 %v307
        %371 = vmatprep.subr.mxu0 0.0
        %372 = vmatpush1.msra.mxu0 %v306
        %373 = vmatprep.subr.mxu0 0.0
        %374 = vmatpush1.msra.mxu0 %v305
        %375 = vmatprep.subr.mxu0 0.0
        %376 = vmatpush1.msra.mxu0 %v304
        %377 = vmatprep.subr.mxu0 0.0
        %378 = vmatpush1.msra.mxu0 %v303
        %379 = vmatprep.subr.mxu0 0.0
        %380 = vmatpush1.msra.mxu0 %v302
        %381 = vmatprep.subr.mxu0 0.0
        %382 = vmatpush1.msra.mxu0 %v301
        %383 = vmatprep.subr.mxu0 0.0
        %384 = vmatpush1.msra.mxu0 %v300
        %385 = vmatprep.subr.mxu0 0.0
        %386 = vmatpush1.msra.mxu0 %v299
        %387 = vmatprep.subr.mxu0 0.0
        %388 = vmatpush1.msra.mxu0 %v298
        %389 = vmatprep.subr.mxu0 0.0
        %390 = vmatpush1.msra.mxu0 %v297
        %391 = vmatprep.subr.mxu0 0.0
        %392 = vmatpush1.msra.mxu0 %v296
        %393 = vmatprep.subr.mxu0 0.0
        %394 = vmatpush1.msra.mxu0 %v295
        %395 = vmatprep.subr.mxu0 0.0
        %396 = vmatpush1.msra.mxu0 %v294
        %397 = vmatprep.subr.mxu0 0.0
        %398 = vmatpush2.msra.mxu0 %v325
        %399 = vmatprep.subr.mxu0 0.0
        %400 = vmatpush2.msra.mxu0 %v324
        %401 = vmatprep.subr.mxu0 0.0
        %402 = vmatpush2.msra.mxu0 %v323
        %403 = vmatprep.subr.mxu0 0.0
        %404 = vmatpush2.msra.mxu0 %v322
        %405 = vmatprep.subr.mxu0 0.0
        %406 = vmatpush2.msra.mxu0 %v321
        %407 = vmatprep.subr.mxu0 0.0
        %408 = vmatpush2.msra.mxu0 %v320
        %409 = vmatprep.subr.mxu0 0.0
        %410 = vmatpush2.msra.mxu0 %v319
        %411 = vmatprep.subr.mxu0 0.0
        %412 = vmatpush2.msra.mxu0 %v318
        %413 = vmatprep.subr.mxu0 0.0
        %414 = vmatpush2.msra.mxu0 %v317
        %415 = vmatprep.subr.mxu0 0.0
        %416 = vmatpush2.msra.mxu0 %v316
        %417 = vmatprep.subr.mxu0 0.0
        %418 = vmatpush2.msra.mxu0 %v315
        %419 = vmatprep.subr.mxu0 0.0
        %420 = vmatpush2.msra.mxu0 %v314
        %421 = vmatprep.subr.mxu0 0.0
        %422 = vmatpush2.msra.mxu0 %v313
        %423 = vmatprep.subr.mxu0 0.0
        %424 = vmatpush2.msra.mxu0 %v312
        %425 = vmatprep.subr.mxu0 0.0
        %426 = vmatpush2.msra.mxu0 %v311
        %427 = vmatprep.subr.mxu0 0.0
        %428 = vmatpush2.msra.mxu0 %v310
        %429 = vmatprep.mubr.f32.mxu0 %v291
        %430 = vmatmul.mubr.f32.gmra.mxu0 %v290
        %v431 = vpop.f32.mrf.mxu0
        %v432 = vadd.f32 %v363, %v431
        %v433 = vpop.f32.mrf.mxu0
        %434 = vdwg.mxu0
        %435 = vmatprep.subr.mxu0 0.0
        %436 = vmatpush1.msra.mxu0 %v341
        %437 = vmatprep.subr.mxu0 0.0
        %438 = vmatpush1.msra.mxu0 %v340
        %439 = vmatprep.subr.mxu0 0.0
        %440 = vmatpush1.msra.mxu0 %v339
        %441 = vmatprep.subr.mxu0 0.0
        %442 = vmatpush1.msra.mxu0 %v338
        %443 = vmatprep.subr.mxu0 0.0
        %444 = vmatpush1.msra.mxu0 %v337
        %445 = vmatprep.subr.mxu0 0.0
        %446 = vmatpush1.msra.mxu0 %v336
        %447 = vmatprep.subr.mxu0 0.0
        %448 = vmatpush1.msra.mxu0 %v335
        %449 = vmatprep.subr.mxu0 0.0
        %450 = vmatpush1.msra.mxu0 %v334
        %451 = vmatprep.subr.mxu0 0.0
        %452 = vmatpush1.msra.mxu0 %v333
        %453 = vmatprep.subr.mxu0 0.0
        %454 = vmatpush1.msra.mxu0 %v332
        %455 = vmatprep.subr.mxu0 0.0
        %456 = vmatpush1.msra.mxu0 %v331
        %457 = vmatprep.subr.mxu0 0.0
        %458 = vmatpush1.msra.mxu0 %v330
        %459 = vmatprep.subr.mxu0 0.0
        %460 = vmatpush1.msra.mxu0 %v329
        %461 = vmatprep.subr.mxu0 0.0
        %462 = vmatpush1.msra.mxu0 %v328
        %463 = vmatprep.subr.mxu0 0.0
        %464 = vmatpush1.msra.mxu0 %v327
        %465 = vmatprep.subr.mxu0 0.0
        %466 = vmatpush1.msra.mxu0 %v326
        %467 = vmatprep.subr.mxu0 0.0
        %468 = vmatpush2.msra.mxu0 %v357
        %469 = vmatprep.subr.mxu0 0.0
        %470 = vmatpush2.msra.mxu0 %v356
        %471 = vmatprep.subr.mxu0 0.0
        %472 = vmatpush2.msra.mxu0 %v355
        %473 = vmatprep.subr.mxu0 0.0
        %474 = vmatpush2.msra.mxu0 %v354
        %475 = vmatprep.subr.mxu0 0.0
        %476 = vmatpush2.msra.mxu0 %v353
        %477 = vmatprep.subr.mxu0 0.0
        %478 = vmatpush2.msra.mxu0 %v352
        %479 = vmatprep.subr.mxu0 0.0
        %480 = vmatpush2.msra.mxu0 %v351
        %481 = vmatprep.subr.mxu0 0.0
        %482 = vmatpush2.msra.mxu0 %v350
        %483 = vmatprep.subr.mxu0 0.0
        %484 = vmatpush2.msra.mxu0 %v349
        %485 = vmatprep.subr.mxu0 0.0
        %486 = vmatpush2.msra.mxu0 %v348
        %487 = vmatprep.subr.mxu0 0.0
        %488 = vmatpush2.msra.mxu0 %v347
        %489 = vmatprep.subr.mxu0 0.0
        %490 = vmatpush2.msra.mxu0 %v346
        %491 = vmatprep.subr.mxu0 0.0
        %492 = vmatpush2.msra.mxu0 %v345
        %493 = vmatprep.subr.mxu0 0.0
        %494 = vmatpush2.msra.mxu0 %v344
        %495 = vmatprep.subr.mxu0 0.0
        %496 = vmatpush2.msra.mxu0 %v343
        %497 = vmatprep.subr.mxu0 0.0
        %498 = vmatpush2.msra.mxu0 %v342
        %499 = vmatprep.mubr.f32.mxu0 %v293
        %500 = vmatmul.mubr.f32.gmra.mxu0 %v292
        %v501 = vpop.f32.mrf.mxu0
        %v502 = vadd.f32 %v432, %v501
        %v503 = vpop.f32.mrf.mxu0
        %504 = vdwg.mxu0
        %vm505 = vcmask 818176
        %506 = vst.msk [vmem:[%s228] sm:$0xff] %vm505, %v502
        %s507 = sand.u32 %s139, 1
        %s508 = scalar_lea.sflag [#allocation3], %s507
        %s509 = sand.u32 %s139, 1
        %s510 = smul.addr %s509, 8
        %s511 = scalar_lea.vmem [#allocation2], %s510
        // Predicated region
        $region37: #{tpu_custom_call.1} parent=35 // pred_check
          %p512 = pneg %p149
        $region38: #{tpu_custom_call.1} parent=35 // pred_check_branch
          %514 = sbr.rel (%p512) target = $region40
        $region39: #{tpu_custom_call.1} parent=35 // pred_region
          %s516 = ssub.s32 128, 128
          %517 = vsyncadd %s508, %s516
          %s518 = sadd.s32 %s23, %s22
          %s519 = smul.addr %s518, 128
          %s520 = scalar_lea.hbm %s4, %s519
          %s522 = sshll.u32 %s511, 4
          %s523 = int_to_ptr.vmem [resolvable:$true] %s522
          %525 = dma.vmem_to_hbm [thread:$0]  %s523, 128, %s520, %s508
        $region40: #{tpu_custom_call.1} parent=35 // pred_fallthru
          _
      $region36: #{tpu_custom_call.1} parent=5 // pred_fallthru
        _
      %p526 = scmp.le.s32.totalorder 2, %s13
      // Predicated region
      $region41: #{tpu_custom_call.1} parent=5 // pred_check
        %p527 = pneg %p526
      $region42: #{tpu_custom_call.1} parent=5 // pred_check_branch
        %529 = sbr.rel (%p527) target = $region44
      $region43: #{tpu_custom_call.1} parent=5 // pred_region
        %s530 = ssub.s32 %s13, 2
        // Predicated region
        $region45: #{tpu_custom_call.1} parent=43 // pred_check
          %p531 = pneg %p155
        $region46: #{tpu_custom_call.1} parent=43 // pred_check_branch
          %533 = sbr.rel (%p531) target = $region48
        $region47: #{tpu_custom_call.1} parent=43 // pred_region
          %s534 = sand.u32 %s140, 1
          %s535 = scalar_lea.sflag [#allocation3], %s534
          %s536 = sand.u32 %s140, 1
          %s537 = smul.addr %s536, 8
          %s538 = scalar_lea.vmem [#allocation2], %s537
          %539 = dma.done %s535, 128
        $region48: #{tpu_custom_call.1} parent=43 // pred_fallthru
          _
      $region44: #{tpu_custom_call.1} parent=5 // pred_fallthru
        _
    $region6: #{tpu_custom_call.1} parent=1 // loop_footer
      %s17 = sadd.s32 1, %s13
    $region7: #{tpu_custom_call.1} parent=1 // loop_footer_branch
      %12 = sbr.rel target = $region3
    $region8: #{tpu_custom_call.1} parent=1 // loop_exit
      _
    %540 = vsyncpa [#allocation3], 1
    %s541 = scalar_lea.sflag [#allocation3], 1
    %542 = vsyncpa %s541, 1

</llo_original>
